<compile_context>
chip_gen: v7x
topology: tpu7x:2x2x1
jax: 0.10.0
libtpu: 0.0.40
codegen_flags: <defaults>
</compile_context>

<pallas_src>
import functools

import jax
import jax.numpy as jnp
from jax import lax
from jax.experimental import pallas as pl
from jax.experimental.pallas import tpu as pltpu


def _round_up(x, m):
    return (x + m - 1) // m * m


def smcn_fused_kernel(uproj_ref, whh_ref, wf_ref, bf_ref, y_ref,
                      x_carry_ref, h_slab_ref):
    """One (m, t) tile: t_blk serial recurrence steps + fused FFN head.

    uproj_ref   : (t_blk, TM, L_pad) compute dtype  pre-projected inputs
                  (u@W_ih + b_ih + b_hh folded in; global step 0 is all-zero)
    whh_ref     : (L_pad, L_pad)     compute dtype  hidden->hidden weight
    wf_ref      : (L_pad, O_pad)     compute dtype  FFN head weight
    bf_ref      : (1, O_pad)         f32            FFN head bias
    y_ref       : (t_blk, TM, O_pad) f32            predictions for this block
    x_carry_ref : (TM, L_pad) f32 VMEM   hidden state carried across time blocks
    h_slab_ref  : (t_blk, TM, L_pad) VMEM  hidden states of this block (for head)
    """
    t_tile = pl.program_id(1)   # t MUST be the last (fastest-varying) grid axis

    @pl.when(t_tile == 0)
    def _():
        # x = torch.zeros(bs, N, latent_size)
        x_carry_ref[...] = jnp.zeros_like(x_carry_ref)

    whh = whh_ref[...]
    cdt = whh.dtype
    t_blk, TM, L_pad = h_slab_ref.shape

    def step(i, x):
        # x_k = tanh(u_proj[k] + x_{k-1} @ W_hh)
        # Carried state and accumulation stay f32; matmul operands use the
        # compute dtype (bf16 by default -> single-pass MXU).
        x_new = jnp.tanh(
            uproj_ref[i].astype(jnp.float32)
            + jnp.dot(x.astype(cdt), whh, preferred_element_type=jnp.float32))
        h_slab_ref[i] = x_new.astype(cdt)
        return x_new

    # Moderate unroll: the chain is serial through x, so full unroll only adds
    # vreg pressure; 8 keeps LLO scheduling visibility.
    x_carry_ref[...] = lax.fori_loop(0, t_blk, step, x_carry_ref[...],
                                     unroll=min(8, t_blk))

    # Fused FFN head: one MXU-dense (t_blk*TM, L_pad) x (L_pad, O_pad) matmul
    # per time block, off the serial critical path. O_pad is a multiple of 128
    # so the output store is lane-dense and unmasked. This removes the
    # hidden-state HBM write + re-read of the unfused version.
    h = h_slab_ref[...].reshape(t_blk * TM, L_pad)
    y = jnp.dot(h, wf_ref[...], preferred_element_type=jnp.float32) + bf_ref[...]
    y_ref[...] = y.reshape(t_blk, TM, y_ref.shape[-1]).astype(y_ref.dtype)


@functools.partial(jax.jit,
                   static_argnames=("n_particles", "compute_dtype", "t_blk"))
def smcn_forward(u, params, n_particles=1, compute_dtype=jnp.bfloat16,
                 t_blk=None):
    """u: (T, B, D_in) float32.  Returns (T, B, N, O) float32."""
    T, B, D_in = u.shape
    N = n_particles
    M = B * N
    L = params["whh"].shape[0]
    O = params["wf"].shape[1]

    # ---- Generation-aware padding / tiling. ----------------------------------
    L_pad = _round_up(L, 128)
    O_pad = _round_up(O, 128)          # lane-dense (unmasked) output stores
    M_pad = _round_up(M, 8)
    if M_pad <= 128:
        TM = M_pad                     # single row tile (full sublane tiles)
    elif M_pad <= 256:
        TM = 128                       # m_tiles = 2 -> feeds v7x's two TCs
        M_pad = _round_up(M_pad, TM)
    else:
        TM = 256                       # fill v6e/v7x's 256-wide MXU rows
        M_pad = _round_up(M_pad, TM)
    m_tiles = M_pad // TM

    in_item = jnp.dtype(compute_dtype).itemsize

    # VMEM budget: derive t_blk and vmem_limit from the chip's capacity
    # (v7x 64 MiB, v5e/v6e 128 MiB), leaving headroom for compiler scratch.
    try:
        vmem_cap = int(pltpu.get_tpu_info().vmem_capacity_bytes)
    except Exception:  # conservative fallback (fits every generation)
        vmem_cap = 64 * 1024 * 1024
    vmem_limit = min(vmem_cap * 3 // 4, 100 * 1024 * 1024)

    if t_blk is None:
        fixed = (2 * L_pad * L_pad * in_item      # W_hh (double-buffered)
                 + 2 * L_pad * O_pad * in_item    # W_f
                 + 2 * O_pad * 4                  # b_f
                 + TM * L_pad * 4)                # carried x scratch (f32)
        per_t = (2 * TM * L_pad * in_item         # u_proj block, double-buffered
                 + TM * L_pad * in_item           # hidden slab scratch
                 + 2 * TM * O_pad * 4)            # y block, double-buffered
        budget = vmem_limit - 4 * 1024 * 1024
        t_blk = int(max(1, (budget - fixed) // per_t))
        t_blk = int(min(t_blk, T, 256))
        # Rebalance so t_blk (nearly) divides T -> minimal padded serial steps.
        t_blk = -(-T // (-(-T // t_blk)))
    t_tiles = -(-T // t_blk)
    T_pad = t_blk * t_tiles

    # ---- Hoisted input projection (one big batched matmul, biases folded). ---
    if N == 1:
        u_rep = u                                              # (T, M, D_in)
    else:
        u_rep = jnp.broadcast_to(u[:, :, None, :],
                                 (T, B, N, D_in)).reshape(T, M, D_in)
    # Pad (T, M) on the small D_in-wide tensor so the projection einsum writes
    # the padded (T_pad, M_pad, L_pad) layout directly — no second full pass
    # over the largest intermediate.
    u_rep = jnp.pad(u_rep, ((0, T_pad - T), (0, M_pad - M), (0, 0)))
    wih_p = jnp.pad(params["wih"], ((0, 0), (0, L_pad - L)))
    bias_p = jnp.pad((params["bih"] + params["bhh"]).reshape(-1), (0, L_pad - L))
    u_proj = jnp.einsum("tmd,dl->tml", u_rep, wih_p,
                        preferred_element_type=jnp.float32) + bias_p
    # Zero step 0: tanh(0 + 0 @ W_hh) = 0 reproduces x_0 = 0, keeping the
    # in-kernel recurrence uniform (no per-step select on the serial path).
    u_proj = u_proj.at[0].set(0.0).astype(compute_dtype)

    whh_p = jnp.pad(params["whh"],
                    ((0, L_pad - L), (0, L_pad - L))).astype(compute_dtype)
    wf_p = jnp.pad(params["wf"],
                   ((0, L_pad - L), (0, O_pad - O))).astype(compute_dtype)
    bf_p = jnp.pad(params["bf"].reshape(1, -1),
                   ((0, 0), (0, O_pad - O))).astype(jnp.float32)

    y_pad = pl.pallas_call(
        smcn_fused_kernel,
        out_shape=jax.ShapeDtypeStruct((T_pad, M_pad, O_pad), jnp.float32),
        grid_spec=pltpu.PrefetchScalarGridSpec(
            num_scalar_prefetch=0,
            # INVARIANT: the t axis must stay LAST (fastest-varying) so each m
            # tile sees t = 0..t_tiles-1 consecutively; the carried-state reset
            # in the kernel keys off t == 0. Do not reorder this grid.
            grid=(m_tiles, t_tiles),
            in_specs=[
                pl.BlockSpec((t_blk, TM, L_pad), lambda m, t: (t, m, 0)),
                # W_hh / W_f / b_f are grid-invariant and stay resident.
                # (pl.Buffered(1) would halve their footprint; negligible at
                #  these sizes, so they keep the default pipeline mode.)
                pl.BlockSpec((L_pad, L_pad), lambda m, t: (0, 0)),
                pl.BlockSpec((L_pad, O_pad), lambda m, t: (0, 0)),
                pl.BlockSpec((1, O_pad), lambda m, t: (0, 0)),
            ],
            out_specs=pl.BlockSpec((t_blk, TM, O_pad), lambda m, t: (t, m, 0)),
            scratch_shapes=[
                pltpu.VMEM((TM, L_pad), jnp.float32),           # carried x (f32)
                pltpu.VMEM((t_blk, TM, L_pad), compute_dtype),  # hidden slab
            ],
        ),
        compiler_params=pltpu.CompilerParams(
            # m rows recur independently -> shardable across v7x's two TCs;
            # t carries the recurrence through scratch -> sequential.
            dimension_semantics=("parallel", "arbitrary"),
            vmem_limit_bytes=int(vmem_limit)),
    )(u_proj, whh_p, wf_p, bf_p)

    # Only the final small y is sliced (the big tensors stayed padded/lane-dense).
    return y_pad[:T, :M, :O].reshape(T, B, N, O)


def init_params(key, input_size, latent_size, output_size):
    ks = jax.random.split(key, 8)
    params = {
        # ParticulesRNNCell (tanh RNN cell), weights stored pre-transposed
        "wih": 0.1 * jax.random.normal(ks[0], (input_size, latent_size), jnp.float32),
        "whh": 0.1 * jax.random.normal(ks[1], (latent_size, latent_size), jnp.float32),
        "bih": 0.1 * jax.random.normal(ks[2], (1, latent_size), jnp.float32),
        "bhh": 0.1 * jax.random.normal(ks[3], (1, latent_size), jnp.float32),
        # FFN head (Linear latent -> output), pre-transposed
        "wf": 0.1 * jax.random.normal(ks[4], (latent_size, output_size), jnp.float32),
        "bf": 0.1 * jax.random.normal(ks[5], (1, output_size), jnp.float32),
        # sigma params exist in the module but are unused on the default path
        "sigma_x": jnp.abs(jax.random.normal(ks[6], (latent_size,), jnp.float32)),
        "sigma_y": jnp.abs(jax.random.normal(ks[7], (output_size,), jnp.float32)),
    }
    return params


def reference_forward(u, params, n_particles=1):
    """Pure-JAX reference of the same recurrence (for correctness check)."""
    T, B, D_in = u.shape
    N = n_particles
    O = params["wf"].shape[1]
    L = params["whh"].shape[0]
    M = B * N
    u_rep = jnp.repeat(u[:, :, None, :], N, axis=2).reshape(T, M, D_in)
    x = jnp.zeros((M, L), jnp.float32)
    preds = [x @ params["wf"] + params["bf"]]
    for k in range(1, T):
        x = jnp.tanh(u_rep[k] @ params["wih"] + params["bih"]
                     + x @ params["whh"] + params["bhh"])
        preds.append(x @ params["wf"] + params["bf"])
    return jnp.stack(preds).reshape(T, B, N, O)


if __name__ == "__main__":
    T, B, N = 8, 2, 1
    input_size, latent_size, output_size = 4, 32, 4

    key = jax.random.PRNGKey(0)
    k_u, k_p = jax.random.split(key)
    u = jax.random.normal(k_u, (T, B, input_size), jnp.float32)
    params = init_params(k_p, input_size, latent_size, output_size)

    ref = reference_forward(u, params, n_particles=N)

    # f32 compute path: tight check against the pure-JAX reference.
    out_f32 = jax.block_until_ready(
        smcn_forward(u, params, n_particles=N, compute_dtype=jnp.float32))
    assert out_f32.shape == (T, B, N, output_size), out_f32.shape
    assert jnp.allclose(out_f32, ref, atol=1e-4, rtol=1e-4), "f32 mismatch"

    # Default bf16 fast path (MXU-native operands, f32 carry/accumulation).
    out = jax.block_until_ready(smcn_forward(u, params, n_particles=N))
    assert out.shape == (T, B, N, output_size), out.shape
    assert jnp.allclose(out, ref, atol=3e-2, rtol=3e-2), "bf16 mismatch"

    print("KERNEL_OK")
</pallas_src>

<mosaic_0001>
module attributes {stable_mosaic.version = 11 : i64} {
  func.func @smcn_fused_kernel(%arg0: i32, %arg1: i32, %arg2: memref<8x8x128xf32, #tpu.memory_space<vmem>>, %arg3: memref<128x128xf32, #tpu.memory_space<vmem>>, %arg4: memref<128x128xf32, #tpu.memory_space<vmem>>, %arg5: memref<1x128xf32, #tpu.memory_space<vmem>>, %arg6: memref<8x8x128xf32, #tpu.memory_space<vmem>>, %arg7: memref<8x128xf32, #tpu.memory_space<vmem>>, %arg8: memref<8x8x128xf32, #tpu.memory_space<vmem>>) attributes {dimension_semantics = [#tpu.dimension_semantics<parallel>, #tpu.dimension_semantics<arbitrary>], iteration_bounds = array<i64: 1, 1>, scalar_prefetch = 0 : i64, scratch_operands = 2 : i64, tpu.core_type = #tpu.core_type<tc>, window_params = [{transform_indices = @transform_0, window_bounds = array<i64: 8, 8, 128>}, {pipeline_mode = #tpu.pipeline_mode<synchronous>, transform_indices = @transform_1, window_bounds = array<i64: 128, 128>}, {pipeline_mode = #tpu.pipeline_mode<synchronous>, transform_indices = @transform_2, window_bounds = array<i64: 128, 128>}, {pipeline_mode = #tpu.pipeline_mode<synchronous>, transform_indices = @transform_3, window_bounds = array<i64: 1, 128>}, {transform_indices = @transform_4, window_bounds = array<i64: 8, 8, 128>}]} {
    %c0_i32 = arith.constant 0 : i32
    %0 = arith.cmpi eq, %arg1, %c0_i32 : i32
    %1 = arith.extui %0 : i1 to i32
    %c0_i32_0 = arith.constant 0 : i32
    %2 = arith.cmpi ne, %1, %c0_i32_0 : i32
    scf.if %2 {
      %cst_57 = arith.constant 0.000000e+00 : f32
      %95 = vector.broadcast %cst_57 : f32 to vector<8x128xf32>
      %c0_58 = arith.constant 0 : index
      %c0_59 = arith.constant 0 : index
      %96 = vector.load %arg7[%c0_58, %c0_59] : memref<8x128xf32, #tpu.memory_space<vmem>>, vector<8x128xf32>
      tpu.vector_store %arg7[%c0_58, %c0_59], %95 {strides = array<i32>} : memref<8x128xf32, #tpu.memory_space<vmem>>, vector<8x128xf32>,
    } else {
    }
    %c0 = arith.constant 0 : index
    %c0_1 = arith.constant 0 : index
    %3 = vector.load %arg3[%c0, %c0_1] : memref<128x128xf32, #tpu.memory_space<vmem>>, vector<128x128xf32>
    %c0_2 = arith.constant 0 : index
    %c0_3 = arith.constant 0 : index
    %4 = vector.load %arg7[%c0_2, %c0_3] : memref<8x128xf32, #tpu.memory_space<vmem>>, vector<8x128xf32>
    %c0_i32_4 = arith.constant 0 : i32
    %5 = arith.index_cast %c0_i32_4 : i32 to index
    %c0_5 = arith.constant 0 : index
    %c0_6 = arith.constant 0 : index
    %6 = vector.load %arg2[%5, %c0_5, %c0_6] : memref<8x8x128xf32, #tpu.memory_space<vmem>>, vector<1x8x128xf32>
    %7 = vector.shape_cast %6 : vector<1x8x128xf32> to vector<8x128xf32>
    %cst = arith.constant dense<0.000000e+00> : vector<8x128xf32>
    %8 = tpu.matmul %4, %3, %cst {dimension_numbers = #tpu.dot_dimension_numbers<[1], [0], [0], [1], [0, 0, 1, 1], [], []>} : vector<8x128xf32>, vector<128x128xf32>, vector<8x128xf32> -> vector<8x128xf32>
    %9 = arith.addf %7, %8 : vector<8x128xf32>
    %10 = math.tanh %9 : vector<8x128xf32>
    %11 = arith.index_cast %c0_i32_4 : i32 to index
    %c0_7 = arith.constant 0 : index
    %c0_8 = arith.constant 0 : index
    %12 = vector.load %arg8[%11, %c0_7, %c0_8] : memref<8x8x128xf32, #tpu.memory_space<vmem>>, vector<1x8x128xf32>
    %13 = vector.shape_cast %12 : vector<1x8x128xf32> to vector<8x128xf32>
    %14 = vector.shape_cast %10 : vector<8x128xf32> to vector<1x8x128xf32>
    tpu.vector_store %arg8[%11, %c0_7, %c0_8], %14 {strides = array<i32>} : memref<8x8x128xf32, #tpu.memory_space<vmem>>, vector<1x8x128xf32>,
    %c1_i32 = arith.constant 1 : i32
    %15 = arith.index_cast %c1_i32 : i32 to index
    %c0_9 = arith.constant 0 : index
    %c0_10 = arith.constant 0 : index
    %16 = vector.load %arg2[%15, %c0_9, %c0_10] : memref<8x8x128xf32, #tpu.memory_space<vmem>>, vector<1x8x128xf32>
    %17 = vector.shape_cast %16 : vector<1x8x128xf32> to vector<8x128xf32>
    %cst_11 = arith.constant dense<0.000000e+00> : vector<8x128xf32>
    %18 = tpu.matmul %10, %3, %cst_11 {dimension_numbers = #tpu.dot_dimension_numbers<[1], [0], [0], [1], [0, 0, 1, 1], [], []>} : vector<8x128xf32>, vector<128x128xf32>, vector<8x128xf32> -> vector<8x128xf32>
    %19 = arith.addf %17, %18 : vector<8x128xf32>
    %20 = math.tanh %19 : vector<8x128xf32>
    %21 = arith.index_cast %c1_i32 : i32 to index
    %c0_12 = arith.constant 0 : index
    %c0_13 = arith.constant 0 : index
    %22 = vector.load %arg8[%21, %c0_12, %c0_13] : memref<8x8x128xf32, #tpu.memory_space<vmem>>, vector<1x8x128xf32>
    %23 = vector.shape_cast %22 : vector<1x8x128xf32> to vector<8x128xf32>
    %24 = vector.shape_cast %20 : vector<8x128xf32> to vector<1x8x128xf32>
    tpu.vector_store %arg8[%21, %c0_12, %c0_13], %24 {strides = array<i32>} : memref<8x8x128xf32, #tpu.memory_space<vmem>>, vector<1x8x128xf32>,
    %c2_i32 = arith.constant 2 : i32
    %25 = arith.index_cast %c2_i32 : i32 to index
    %c0_14 = arith.constant 0 : index
    %c0_15 = arith.constant 0 : index
    %26 = vector.load %arg2[%25, %c0_14, %c0_15] : memref<8x8x128xf32, #tpu.memory_space<vmem>>, vector<1x8x128xf32>
    %27 = vector.shape_cast %26 : vector<1x8x128xf32> to vector<8x128xf32>
    %cst_16 = arith.constant dense<0.000000e+00> : vector<8x128xf32>
    %28 = tpu.matmul %20, %3, %cst_16 {dimension_numbers = #tpu.dot_dimension_numbers<[1], [0], [0], [1], [0, 0, 1, 1], [], []>} : vector<8x128xf32>, vector<128x128xf32>, vector<8x128xf32> -> vector<8x128xf32>
    %29 = arith.addf %27, %28 : vector<8x128xf32>
    %30 = math.tanh %29 : vector<8x128xf32>
    %31 = arith.index_cast %c2_i32 : i32 to index
    %c0_17 = arith.constant 0 : index
    %c0_18 = arith.constant 0 : index
    %32 = vector.load %arg8[%31, %c0_17, %c0_18] : memref<8x8x128xf32, #tpu.memory_space<vmem>>, vector<1x8x128xf32>
    %33 = vector.shape_cast %32 : vector<1x8x128xf32> to vector<8x128xf32>
    %34 = vector.shape_cast %30 : vector<8x128xf32> to vector<1x8x128xf32>
    tpu.vector_store %arg8[%31, %c0_17, %c0_18], %34 {strides = array<i32>} : memref<8x8x128xf32, #tpu.memory_space<vmem>>, vector<1x8x128xf32>,
    %c3_i32 = arith.constant 3 : i32
    %35 = arith.index_cast %c3_i32 : i32 to index
    %c0_19 = arith.constant 0 : index
    %c0_20 = arith.constant 0 : index
    %36 = vector.load %arg2[%35, %c0_19, %c0_20] : memref<8x8x128xf32, #tpu.memory_space<vmem>>, vector<1x8x128xf32>
    %37 = vector.shape_cast %36 : vector<1x8x128xf32> to vector<8x128xf32>
    %cst_21 = arith.constant dense<0.000000e+00> : vector<8x128xf32>
    %38 = tpu.matmul %30, %3, %cst_21 {dimension_numbers = #tpu.dot_dimension_numbers<[1], [0], [0], [1], [0, 0, 1, 1], [], []>} : vector<8x128xf32>, vector<128x128xf32>, vector<8x128xf32> -> vector<8x128xf32>
    %39 = arith.addf %37, %38 : vector<8x128xf32>
    %40 = math.tanh %39 : vector<8x128xf32>
    %41 = arith.index_cast %c3_i32 : i32 to index
    %c0_22 = arith.constant 0 : index
    %c0_23 = arith.constant 0 : index
    %42 = vector.load %arg8[%41, %c0_22, %c0_23] : memref<8x8x128xf32, #tpu.memory_space<vmem>>, vector<1x8x128xf32>
    %43 = vector.shape_cast %42 : vector<1x8x128xf32> to vector<8x128xf32>
    %44 = vector.shape_cast %40 : vector<8x128xf32> to vector<1x8x128xf32>
    tpu.vector_store %arg8[%41, %c0_22, %c0_23], %44 {strides = array<i32>} : memref<8x8x128xf32, #tpu.memory_space<vmem>>, vector<1x8x128xf32>,
    %c4_i32 = arith.constant 4 : i32
    %45 = arith.index_cast %c4_i32 : i32 to index
    %c0_24 = arith.constant 0 : index
    %c0_25 = arith.constant 0 : index
    %46 = vector.load %arg2[%45, %c0_24, %c0_25] : memref<8x8x128xf32, #tpu.memory_space<vmem>>, vector<1x8x128xf32>
    %47 = vector.shape_cast %46 : vector<1x8x128xf32> to vector<8x128xf32>
    %cst_26 = arith.constant dense<0.000000e+00> : vector<8x128xf32>
    %48 = tpu.matmul %40, %3, %cst_26 {dimension_numbers = #tpu.dot_dimension_numbers<[1], [0], [0], [1], [0, 0, 1, 1], [], []>} : vector<8x128xf32>, vector<128x128xf32>, vector<8x128xf32> -> vector<8x128xf32>
    %49 = arith.addf %47, %48 : vector<8x128xf32>
    %50 = math.tanh %49 : vector<8x128xf32>
    %51 = arith.index_cast %c4_i32 : i32 to index
    %c0_27 = arith.constant 0 : index
    %c0_28 = arith.constant 0 : index
    %52 = vector.load %arg8[%51, %c0_27, %c0_28] : memref<8x8x128xf32, #tpu.memory_space<vmem>>, vector<1x8x128xf32>
    %53 = vector.shape_cast %52 : vector<1x8x128xf32> to vector<8x128xf32>
    %54 = vector.shape_cast %50 : vector<8x128xf32> to vector<1x8x128xf32>
    tpu.vector_store %arg8[%51, %c0_27, %c0_28], %54 {strides = array<i32>} : memref<8x8x128xf32, #tpu.memory_space<vmem>>, vector<1x8x128xf32>,
    %c5_i32 = arith.constant 5 : i32
    %55 = arith.index_cast %c5_i32 : i32 to index
    %c0_29 = arith.constant 0 : index
    %c0_30 = arith.constant 0 : index
    %56 = vector.load %arg2[%55, %c0_29, %c0_30] : memref<8x8x128xf32, #tpu.memory_space<vmem>>, vector<1x8x128xf32>
    %57 = vector.shape_cast %56 : vector<1x8x128xf32> to vector<8x128xf32>
    %cst_31 = arith.constant dense<0.000000e+00> : vector<8x128xf32>
    %58 = tpu.matmul %50, %3, %cst_31 {dimension_numbers = #tpu.dot_dimension_numbers<[1], [0], [0], [1], [0, 0, 1, 1], [], []>} : vector<8x128xf32>, vector<128x128xf32>, vector<8x128xf32> -> vector<8x128xf32>
    %59 = arith.addf %57, %58 : vector<8x128xf32>
    %60 = math.tanh %59 : vector<8x128xf32>
    %61 = arith.index_cast %c5_i32 : i32 to index
    %c0_32 = arith.constant 0 : index
    %c0_33 = arith.constant 0 : index
    %62 = vector.load %arg8[%61, %c0_32, %c0_33] : memref<8x8x128xf32, #tpu.memory_space<vmem>>, vector<1x8x128xf32>
    %63 = vector.shape_cast %62 : vector<1x8x128xf32> to vector<8x128xf32>
    %64 = vector.shape_cast %60 : vector<8x128xf32> to vector<1x8x128xf32>
    tpu.vector_store %arg8[%61, %c0_32, %c0_33], %64 {strides = array<i32>} : memref<8x8x128xf32, #tpu.memory_space<vmem>>, vector<1x8x128xf32>,
    %c6_i32 = arith.constant 6 : i32
    %65 = arith.index_cast %c6_i32 : i32 to index
    %c0_34 = arith.constant 0 : index
    %c0_35 = arith.constant 0 : index
    %66 = vector.load %arg2[%65, %c0_34, %c0_35] : memref<8x8x128xf32, #tpu.memory_space<vmem>>, vector<1x8x128xf32>
    %67 = vector.shape_cast %66 : vector<1x8x128xf32> to vector<8x128xf32>
    %cst_36 = arith.constant dense<0.000000e+00> : vector<8x128xf32>
    %68 = tpu.matmul %60, %3, %cst_36 {dimension_numbers = #tpu.dot_dimension_numbers<[1], [0], [0], [1], [0, 0, 1, 1], [], []>} : vector<8x128xf32>, vector<128x128xf32>, vector<8x128xf32> -> vector<8x128xf32>
    %69 = arith.addf %67, %68 : vector<8x128xf32>
    %70 = math.tanh %69 : vector<8x128xf32>
    %71 = arith.index_cast %c6_i32 : i32 to index
    %c0_37 = arith.constant 0 : index
    %c0_38 = arith.constant 0 : index
    %72 = vector.load %arg8[%71, %c0_37, %c0_38] : memref<8x8x128xf32, #tpu.memory_space<vmem>>, vector<1x8x128xf32>
    %73 = vector.shape_cast %72 : vector<1x8x128xf32> to vector<8x128xf32>
    %74 = vector.shape_cast %70 : vector<8x128xf32> to vector<1x8x128xf32>
    tpu.vector_store %arg8[%71, %c0_37, %c0_38], %74 {strides = array<i32>} : memref<8x8x128xf32, #tpu.memory_space<vmem>>, vector<1x8x128xf32>,
    %c7_i32 = arith.constant 7 : i32
    %75 = arith.index_cast %c7_i32 : i32 to index
    %c0_39 = arith.constant 0 : index
    %c0_40 = arith.constant 0 : index
    %76 = vector.load %arg2[%75, %c0_39, %c0_40] : memref<8x8x128xf32, #tpu.memory_space<vmem>>, vector<1x8x128xf32>
    %77 = vector.shape_cast %76 : vector<1x8x128xf32> to vector<8x128xf32>
    %cst_41 = arith.constant dense<0.000000e+00> : vector<8x128xf32>
    %78 = tpu.matmul %70, %3, %cst_41 {dimension_numbers = #tpu.dot_dimension_numbers<[1], [0], [0], [1], [0, 0, 1, 1], [], []>} : vector<8x128xf32>, vector<128x128xf32>, vector<8x128xf32> -> vector<8x128xf32>
    %79 = arith.addf %77, %78 : vector<8x128xf32>
    %80 = math.tanh %79 : vector<8x128xf32>
    %81 = arith.index_cast %c7_i32 : i32 to index
    %c0_42 = arith.constant 0 : index
    %c0_43 = arith.constant 0 : index
    %82 = vector.load %arg8[%81, %c0_42, %c0_43] : memref<8x8x128xf32, #tpu.memory_space<vmem>>, vector<1x8x128xf32>
    %83 = vector.shape_cast %82 : vector<1x8x128xf32> to vector<8x128xf32>
    %84 = vector.shape_cast %80 : vector<8x128xf32> to vector<1x8x128xf32>
    tpu.vector_store %arg8[%81, %c0_42, %c0_43], %84 {strides = array<i32>} : memref<8x8x128xf32, #tpu.memory_space<vmem>>, vector<1x8x128xf32>,
    %c8_i32 = arith.constant 8 : i32
    %c0_44 = arith.constant 0 : index
    %c0_45 = arith.constant 0 : index
    %85 = vector.load %arg7[%c0_44, %c0_45] : memref<8x128xf32, #tpu.memory_space<vmem>>, vector<8x128xf32>
    tpu.vector_store %arg7[%c0_44, %c0_45], %80 {strides = array<i32>} : memref<8x128xf32, #tpu.memory_space<vmem>>, vector<8x128xf32>,
    %c0_46 = arith.constant 0 : index
    %c0_47 = arith.constant 0 : index
    %c0_48 = arith.constant 0 : index
    %86 = vector.load %arg8[%c0_46, %c0_47, %c0_48] : memref<8x8x128xf32, #tpu.memory_space<vmem>>, vector<8x8x128xf32>
    %87 = vector.shape_cast %86 : vector<8x8x128xf32> to vector<64x128xf32>
    %c0_49 = arith.constant 0 : index
    %c0_50 = arith.constant 0 : index
    %88 = vector.load %arg4[%c0_49, %c0_50] : memref<128x128xf32, #tpu.memory_space<vmem>>, vector<128x128xf32>
    %cst_51 = arith.constant dense<0.000000e+00> : vector<64x128xf32>
    %89 = tpu.matmul %87, %88, %cst_51 {dimension_numbers = #tpu.dot_dimension_numbers<[1], [0], [0], [1], [0, 0, 1, 1], [], []>} : vector<64x128xf32>, vector<128x128xf32>, vector<64x128xf32> -> vector<64x128xf32>
    %c0_52 = arith.constant 0 : index
    %c0_53 = arith.constant 0 : index
    %90 = vector.load %arg5[%c0_52, %c0_53] : memref<1x128xf32, #tpu.memory_space<vmem>>, vector<1x128xf32>
    %91 = vector.broadcast %90 : vector<1x128xf32> to vector<64x128xf32>
    %92 = arith.addf %89, %91 : vector<64x128xf32>
    %93 = vector.shape_cast %92 : vector<64x128xf32> to vector<8x8x128xf32>
    %c0_54 = arith.constant 0 : index
    %c0_55 = arith.constant 0 : index
    %c0_56 = arith.constant 0 : index
    %94 = vector.load %arg6[%c0_54, %c0_55, %c0_56] : memref<8x8x128xf32, #tpu.memory_space<vmem>>, vector<8x8x128xf32>
    tpu.vector_store %arg6[%c0_54, %c0_55, %c0_56], %93 {strides = array<i32>} : memref<8x8x128xf32, #tpu.memory_space<vmem>>, vector<8x8x128xf32>,
    return
  }
  func.func @transform_0(%arg0: i32, %arg1: i32) -> (i32, i32, i32) {
    %c0_i32 = arith.constant 0 : i32
    %c0_i32_0 = arith.constant 0 : i32
    return %arg1, %arg0, %c0_i32 : i32, i32, i32
  }
  func.func @transform_1(%arg0: i32, %arg1: i32) -> (i32, i32) {
    %c0_i32 = arith.constant 0 : i32
    %c0_i32_0 = arith.constant 0 : i32
    %c0_i32_1 = arith.constant 0 : i32
    return %c0_i32, %c0_i32_0 : i32, i32
  }
  func.func @transform_2(%arg0: i32, %arg1: i32) -> (i32, i32) {
    %c0_i32 = arith.constant 0 : i32
    %c0_i32_0 = arith.constant 0 : i32
    %c0_i32_1 = arith.constant 0 : i32
    return %c0_i32, %c0_i32_0 : i32, i32
  }
  func.func @transform_3(%arg0: i32, %arg1: i32) -> (i32, i32) {
    %c0_i32 = arith.constant 0 : i32
    %c0_i32_0 = arith.constant 0 : i32
    %c0_i32_1 = arith.constant 0 : i32
    return %c0_i32, %c0_i32_0 : i32, i32
  }
  func.func @transform_4(%arg0: i32, %arg1: i32) -> (i32, i32, i32) {
    %c0_i32 = arith.constant 0 : i32
    %c0_i32_0 = arith.constant 0 : i32
    return %arg1, %arg0, %c0_i32 : i32, i32, i32
  }
}

</mosaic_0001>

<llo_original>
// kernel: smcn_forward.1
$region0: #{smcn_forward.1}
  #allocation0 [shape = 'u32[]', space=smem, size = 0x4, offset = 0x4, fixed_abs, tag = 'smem constant byte address 0x4 - core index']
  #allocation1 [shape = 'u32[144,128]{1,0:T(1,128)}', space=vmem, size = 0x12000, scoped, tag = 'internal scratch']
  #allocation2 [shape = 'f32[8,128]{1,0:T(8,128)}', space=vmem, size = 0x1000, scoped, tag = 'scratch operand']
  #allocation3 [shape = 'f32[8,8,128]{2,1,0:T(8,128)}', space=vmem, size = 0x8000, scoped, tag = 'scratch operand']
  %s0 = inlined_call_operand.vmem [shape: f32[8,8,128], index: 0, kind: input, shape index: {}]
  %s1 = inlined_call_operand.vmem [shape: f32[128,128], index: 1, kind: input, shape index: {}]
  %s2 = inlined_call_operand.vmem [shape: f32[128,128], index: 2, kind: input, shape index: {}]
  %s3 = inlined_call_operand.vmem [shape: f32[1,128], index: 3, kind: input, shape index: {}]
  %s4 = inlined_call_operand.vmem [shape: f32[8,8,128], index: 4, kind: output, shape index: {}]
  %s5 = sld [smem:[#allocation0]]
  $region30: #{smcn_forward.1} parent=0
    _
  %s7 = ssub.s32 1, %s5
  %s8 = scalar_select 0, %s7, %s5
  // Predicated region
  $region2: #{smcn_forward.1} parent=0 // pred_check
    _
  $region3: #{smcn_forward.1} parent=0 // pred_check_branch
    %10 = sbr.rel (0) target = $region5
  $region4: #{smcn_forward.1} parent=0 // pred_region
    _
  $region5: #{smcn_forward.1} parent=0 // pred_fallthru
    _
  // Predicated region
  $region6: #{smcn_forward.1} parent=0 // pred_check
    _
  $region7: #{smcn_forward.1} parent=0 // pred_check_branch
    %12 = sbr.rel (0) target = $region9
  $region8: #{smcn_forward.1} parent=0 // pred_region
    _
  $region9: #{smcn_forward.1} parent=0 // pred_fallthru
    _
  // Predicated region
  $region10: #{smcn_forward.1} parent=0 // pred_check
    _
  $region11: #{smcn_forward.1} parent=0 // pred_check_branch
    %14 = sbr.rel (0) target = $region13
  $region12: #{smcn_forward.1} parent=0 // pred_region
    _
  $region13: #{smcn_forward.1} parent=0 // pred_fallthru
    _
  // Predicated region
  $region14: #{smcn_forward.1} parent=0 // pred_check
    _
  $region15: #{smcn_forward.1} parent=0 // pred_check_branch
    %16 = sbr.rel (0) target = $region17
  $region16: #{smcn_forward.1} parent=0 // pred_region
    _
  $region17: #{smcn_forward.1} parent=0 // pred_fallthru
    _
  %p17 = scmp.eq.s32.totalorder 0, 0
  // Predicated region
  $region18: #{smcn_forward.1} parent=0 // pred_check
    %p18 = pneg %p17
  $region19: #{smcn_forward.1} parent=0 // pred_check_branch
    %20 = sbr.rel (%p18) target = $region21
  $region20: #{smcn_forward.1} parent=0 // pred_region
    %21 = vst [vmem:[#allocation2] sm:$0xff] 0.0
  $region21: #{smcn_forward.1} parent=0 // pred_fallthru
    _
  %v22 = vld [vmem:[%s1] sm:$0xff]
  %v23 = vld [vmem:[%s1 + $0x8] sm:$0xff]
  %v24 = vld [vmem:[%s1 + $0x10] sm:$0xff]
  %v25 = vld [vmem:[%s1 + $0x18] sm:$0xff]
  %v26 = vld [vmem:[%s1 + $0x20] sm:$0xff]
  %v27 = vld [vmem:[%s1 + $0x28] sm:$0xff]
  %v28 = vld [vmem:[%s1 + $0x30] sm:$0xff]
  %v29 = vld [vmem:[%s1 + $0x38] sm:$0xff]
  %v30 = vld [vmem:[%s1 + $0x40] sm:$0xff]
  %v31 = vld [vmem:[%s1 + $0x48] sm:$0xff]
  %v32 = vld [vmem:[%s1 + $0x50] sm:$0xff]
  %v33 = vld [vmem:[%s1 + $0x58] sm:$0xff]
  %v34 = vld [vmem:[%s1 + $0x60] sm:$0xff]
  %v35 = vld [vmem:[%s1 + $0x68] sm:$0xff]
  %v36 = vld [vmem:[%s1 + $0x70] sm:$0xff]
  %v37 = vld [vmem:[%s1 + $0x78] sm:$0xff]
  %v38 = vld [vmem:[#allocation2] sm:$0xff]
  %v39 = vld [vmem:[%s0] sm:$0xff]
  %40 = vmatprep.subr.mxu0 0.0
  %41 = vmatpush1.msra.mxu0 %v22
  %42 = vmatprep.subr.mxu0 0.0
  %43 = vmatpush1.msra.mxu0 %v23
  %44 = vmatprep.subr.mxu0 0.0
  %45 = vmatpush1.msra.mxu0 %v24
  %46 = vmatprep.subr.mxu0 0.0
  %47 = vmatpush1.msra.mxu0 %v25
  %48 = vmatprep.subr.mxu0 0.0
  %49 = vmatpush1.msra.mxu0 %v26
  %50 = vmatprep.subr.mxu0 0.0
  %51 = vmatpush1.msra.mxu0 %v27
  %52 = vmatprep.subr.mxu0 0.0
  %53 = vmatpush1.msra.mxu0 %v28
  %54 = vmatprep.subr.mxu0 0.0
  %55 = vmatpush1.msra.mxu0 %v29
  %56 = vmatprep.subr.mxu0 0.0
  %57 = vmatpush1.msra.mxu0 %v30
  %58 = vmatprep.subr.mxu0 0.0
  %59 = vmatpush1.msra.mxu0 %v31
  %60 = vmatprep.subr.mxu0 0.0
  %61 = vmatpush1.msra.mxu0 %v32
  %62 = vmatprep.subr.mxu0 0.0
  %63 = vmatpush1.msra.mxu0 %v33
  %64 = vmatprep.subr.mxu0 0.0
  %65 = vmatpush1.msra.mxu0 %v34
  %66 = vmatprep.subr.mxu0 0.0
  %67 = vmatpush1.msra.mxu0 %v35
  %68 = vmatprep.subr.mxu0 0.0
  %69 = vmatpush1.msra.mxu0 %v36
  %70 = vmatprep.subr.mxu0 0.0
  %71 = vmatpush1.msra.mxu0 %v37
  %72 = vmatprep.subr.mxu0 0.0
  %73 = vmatpush1.msra.mxu0 0.0
  %74 = vmatprep.subr.mxu0 0.0
  %75 = vmatpush1.msra.mxu0 0.0
  %76 = vmatprep.subr.mxu0 0.0
  %77 = vmatpush1.msra.mxu0 0.0
  %78 = vmatprep.subr.mxu0 0.0
  %79 = vmatpush1.msra.mxu0 0.0
  %80 = vmatprep.subr.mxu0 0.0
  %81 = vmatpush1.msra.mxu0 0.0
  %82 = vmatprep.subr.mxu0 0.0
  %83 = vmatpush1.msra.mxu0 0.0
  %84 = vmatprep.subr.mxu0 0.0
  %85 = vmatpush1.msra.mxu0 0.0
  %86 = vmatprep.subr.mxu0 0.0
  %87 = vmatpush1.msra.mxu0 0.0
  %88 = vmatprep.subr.mxu0 0.0
  %89 = vmatpush1.msra.mxu0 0.0
  %90 = vmatprep.subr.mxu0 0.0
  %91 = vmatpush1.msra.mxu0 0.0
  %92 = vmatprep.subr.mxu0 0.0
  %93 = vmatpush1.msra.mxu0 0.0
  %94 = vmatprep.subr.mxu0 0.0
  %95 = vmatpush1.msra.mxu0 0.0
  %96 = vmatprep.subr.mxu0 0.0
  %97 = vmatpush1.msra.mxu0 0.0
  %98 = vmatprep.subr.mxu0 0.0
  %99 = vmatpush1.msra.mxu0 0.0
  %100 = vmatprep.subr.mxu0 0.0
  %101 = vmatpush1.msra.mxu0 0.0
  %102 = vmatprep.subr.mxu0 0.0
  %103 = vmatpush1.msra.mxu0 0.0
  %104 = vmatprep.mubr.f32.mxu0 0.0
  %105 = vmatmul.mubr.f32.gmra.mrb[0].mxu0 %v38
  %v106 = vpop.f32.mrb[0].mxu0
  %v107 = vadd.f32 0.0, %v106
  %v108 = vpop.f32.mrb[0].mxu0
  %109 = vdwg.mxu0
  %v110 = vadd.f32 %v39, %v107
  %v111 = vtanh.pop %v110
  %112 = vst [vmem:[#allocation3] sm:$0xff] %v111
  %s113 = scalar_lea.vmem %s0, 8
  %v114 = vld [vmem:[%s113] sm:$0xff]
  %115 = vmatprep.subr.mxu0 0.0
  %116 = vmatpush1.msra.mxu0 %v22
  %117 = vmatprep.subr.mxu0 0.0
  %118 = vmatpush1.msra.mxu0 %v23
  %119 = vmatprep.subr.mxu0 0.0
  %120 = vmatpush1.msra.mxu0 %v24
  %121 = vmatprep.subr.mxu0 0.0
  %122 = vmatpush1.msra.mxu0 %v25
  %123 = vmatprep.subr.mxu0 0.0
  %124 = vmatpush1.msra.mxu0 %v26
  %125 = vmatprep.subr.mxu0 0.0
  %126 = vmatpush1.msra.mxu0 %v27
  %127 = vmatprep.subr.mxu0 0.0
  %128 = vmatpush1.msra.mxu0 %v28
  %129 = vmatprep.subr.mxu0 0.0
  %130 = vmatpush1.msra.mxu0 %v29
  %131 = vmatprep.subr.mxu0 0.0
  %132 = vmatpush1.msra.mxu0 %v30
  %133 = vmatprep.subr.mxu0 0.0
  %134 = vmatpush1.msra.mxu0 %v31
  %135 = vmatprep.subr.mxu0 0.0
  %136 = vmatpush1.msra.mxu0 %v32
  %137 = vmatprep.subr.mxu0 0.0
  %138 = vmatpush1.msra.mxu0 %v33
  %139 = vmatprep.subr.mxu0 0.0
  %140 = vmatpush1.msra.mxu0 %v34
  %141 = vmatprep.subr.mxu0 0.0
  %142 = vmatpush1.msra.mxu0 %v35
  %143 = vmatprep.subr.mxu0 0.0
  %144 = vmatpush1.msra.mxu0 %v36
  %145 = vmatprep.subr.mxu0 0.0
  %146 = vmatpush1.msra.mxu0 %v37
  %147 = vmatprep.subr.mxu0 0.0
  %148 = vmatpush1.msra.mxu0 0.0
  %149 = vmatprep.subr.mxu0 0.0
  %150 = vmatpush1.msra.mxu0 0.0
  %151 = vmatprep.subr.mxu0 0.0
  %152 = vmatpush1.msra.mxu0 0.0
  %153 = vmatprep.subr.mxu0 0.0
  %154 = vmatpush1.msra.mxu0 0.0
  %155 = vmatprep.subr.mxu0 0.0
  %156 = vmatpush1.msra.mxu0 0.0
  %157 = vmatprep.subr.mxu0 0.0
  %158 = vmatpush1.msra.mxu0 0.0
  %159 = vmatprep.subr.mxu0 0.0
  %160 = vmatpush1.msra.mxu0 0.0
  %161 = vmatprep.subr.mxu0 0.0
  %162 = vmatpush1.msra.mxu0 0.0
  %163 = vmatprep.subr.mxu0 0.0
  %164 = vmatpush1.msra.mxu0 0.0
  %165 = vmatprep.subr.mxu0 0.0
  %166 = vmatpush1.msra.mxu0 0.0
  %167 = vmatprep.subr.mxu0 0.0
  %168 = vmatpush1.msra.mxu0 0.0
  %169 = vmatprep.subr.mxu0 0.0
  %170 = vmatpush1.msra.mxu0 0.0
  %171 = vmatprep.subr.mxu0 0.0
  %172 = vmatpush1.msra.mxu0 0.0
  %173 = vmatprep.subr.mxu0 0.0
  %174 = vmatpush1.msra.mxu0 0.0
  %175 = vmatprep.subr.mxu0 0.0
  %176 = vmatpush1.msra.mxu0 0.0
  %177 = vmatprep.subr.mxu0 0.0
  %178 = vmatpush1.msra.mxu0 0.0
  %179 = vmatprep.mubr.f32.mxu0 0.0
  %180 = vmatmul.mubr.f32.gmra.mrb[0].mxu0 %v111
  %v181 = vpop.f32.mrb[0].mxu0
  %v182 = vadd.f32 0.0, %v181
  %v183 = vpop.f32.mrb[0].mxu0
  %184 = vdwg.mxu0
  %v185 = vadd.f32 %v114, %v182
  %v186 = vtanh.pop %v185
  %s187 = scalar_lea.vmem [#allocation3], 8
  %188 = vst [vmem:[%s187] sm:$0xff] %v186
  %s189 = scalar_lea.vmem %s0, 16
  %v190 = vld [vmem:[%s189] sm:$0xff]
  %191 = vmatprep.subr.mxu0 0.0
  %192 = vmatpush1.msra.mxu0 %v22
  %193 = vmatprep.subr.mxu0 0.0
  %194 = vmatpush1.msra.mxu0 %v23
  %195 = vmatprep.subr.mxu0 0.0
  %196 = vmatpush1.msra.mxu0 %v24
  %197 = vmatprep.subr.mxu0 0.0
  %198 = vmatpush1.msra.mxu0 %v25
  %199 = vmatprep.subr.mxu0 0.0
  %200 = vmatpush1.msra.mxu0 %v26
  %201 = vmatprep.subr.mxu0 0.0
  %202 = vmatpush1.msra.mxu0 %v27
  %203 = vmatprep.subr.mxu0 0.0
  %204 = vmatpush1.msra.mxu0 %v28
  %205 = vmatprep.subr.mxu0 0.0
  %206 = vmatpush1.msra.mxu0 %v29
  %207 = vmatprep.subr.mxu0 0.0
  %208 = vmatpush1.msra.mxu0 %v30
  %209 = vmatprep.subr.mxu0 0.0
  %210 = vmatpush1.msra.mxu0 %v31
  %211 = vmatprep.subr.mxu0 0.0
  %212 = vmatpush1.msra.mxu0 %v32
  %213 = vmatprep.subr.mxu0 0.0
  %214 = vmatpush1.msra.mxu0 %v33
  %215 = vmatprep.subr.mxu0 0.0
  %216 = vmatpush1.msra.mxu0 %v34
  %217 = vmatprep.subr.mxu0 0.0
  %218 = vmatpush1.msra.mxu0 %v35
  %219 = vmatprep.subr.mxu0 0.0
  %220 = vmatpush1.msra.mxu0 %v36
  %221 = vmatprep.subr.mxu0 0.0
  %222 = vmatpush1.msra.mxu0 %v37
  %223 = vmatprep.subr.mxu0 0.0
  %224 = vmatpush1.msra.mxu0 0.0
  %225 = vmatprep.subr.mxu0 0.0
  %226 = vmatpush1.msra.mxu0 0.0
  %227 = vmatprep.subr.mxu0 0.0
  %228 = vmatpush1.msra.mxu0 0.0
  %229 = vmatprep.subr.mxu0 0.0
  %230 = vmatpush1.msra.mxu0 0.0
  %231 = vmatprep.subr.mxu0 0.0
  %232 = vmatpush1.msra.mxu0 0.0
  %233 = vmatprep.subr.mxu0 0.0
  %234 = vmatpush1.msra.mxu0 0.0
  %235 = vmatprep.subr.mxu0 0.0
  %236 = vmatpush1.msra.mxu0 0.0
  %237 = vmatprep.subr.mxu0 0.0
  %238 = vmatpush1.msra.mxu0 0.0
  %239 = vmatprep.subr.mxu0 0.0
  %240 = vmatpush1.msra.mxu0 0.0
  %241 = vmatprep.subr.mxu0 0.0
  %242 = vmatpush1.msra.mxu0 0.0
  %243 = vmatprep.subr.mxu0 0.0
  %244 = vmatpush1.msra.mxu0 0.0
  %245 = vmatprep.subr.mxu0 0.0
  %246 = vmatpush1.msra.mxu0 0.0
  %247 = vmatprep.subr.mxu0 0.0
  %248 = vmatpush1.msra.mxu0 0.0
  %249 = vmatprep.subr.mxu0 0.0
  %250 = vmatpush1.msra.mxu0 0.0
  %251 = vmatprep.subr.mxu0 0.0
  %252 = vmatpush1.msra.mxu0 0.0
  %253 = vmatprep.subr.mxu0 0.0
  %254 = vmatpush1.msra.mxu0 0.0
  %255 = vmatprep.mubr.f32.mxu0 0.0
  %256 = vmatmul.mubr.f32.gmra.mrb[0].mxu0 %v186
  %v257 = vpop.f32.mrb[0].mxu0
  %v258 = vadd.f32 0.0, %v257
  %v259 = vpop.f32.mrb[0].mxu0
  %260 = vdwg.mxu0
  %v261 = vadd.f32 %v190, %v258
  %v262 = vtanh.pop %v261
  %s263 = scalar_lea.vmem [#allocation3], 16
  %264 = vst [vmem:[%s263] sm:$0xff] %v262
  %s265 = scalar_lea.vmem %s0, 24
  %v266 = vld [vmem:[%s265] sm:$0xff]
  %267 = vmatprep.subr.mxu0 0.0
  %268 = vmatpush1.msra.mxu0 %v22
  %269 = vmatprep.subr.mxu0 0.0
  %270 = vmatpush1.msra.mxu0 %v23
  %271 = vmatprep.subr.mxu0 0.0
  %272 = vmatpush1.msra.mxu0 %v24
  %273 = vmatprep.subr.mxu0 0.0
  %274 = vmatpush1.msra.mxu0 %v25
  %275 = vmatprep.subr.mxu0 0.0
  %276 = vmatpush1.msra.mxu0 %v26
  %277 = vmatprep.subr.mxu0 0.0
  %278 = vmatpush1.msra.mxu0 %v27
  %279 = vmatprep.subr.mxu0 0.0
  %280 = vmatpush1.msra.mxu0 %v28
  %281 = vmatprep.subr.mxu0 0.0
  %282 = vmatpush1.msra.mxu0 %v29
  %283 = vmatprep.subr.mxu0 0.0
  %284 = vmatpush1.msra.mxu0 %v30
  %285 = vmatprep.subr.mxu0 0.0
  %286 = vmatpush1.msra.mxu0 %v31
  %287 = vmatprep.subr.mxu0 0.0
  %288 = vmatpush1.msra.mxu0 %v32
  %289 = vmatprep.subr.mxu0 0.0
  %290 = vmatpush1.msra.mxu0 %v33
  %291 = vmatprep.subr.mxu0 0.0
  %292 = vmatpush1.msra.mxu0 %v34
  %293 = vmatprep.subr.mxu0 0.0
  %294 = vmatpush1.msra.mxu0 %v35
  %295 = vmatprep.subr.mxu0 0.0
  %296 = vmatpush1.msra.mxu0 %v36
  %297 = vmatprep.subr.mxu0 0.0
  %298 = vmatpush1.msra.mxu0 %v37
  %299 = vmatprep.subr.mxu0 0.0
  %300 = vmatpush1.msra.mxu0 0.0
  %301 = vmatprep.subr.mxu0 0.0
  %302 = vmatpush1.msra.mxu0 0.0
  %303 = vmatprep.subr.mxu0 0.0
  %304 = vmatpush1.msra.mxu0 0.0
  %305 = vmatprep.subr.mxu0 0.0
  %306 = vmatpush1.msra.mxu0 0.0
  %307 = vmatprep.subr.mxu0 0.0
  %308 = vmatpush1.msra.mxu0 0.0
  %309 = vmatprep.subr.mxu0 0.0
  %310 = vmatpush1.msra.mxu0 0.0
  %311 = vmatprep.subr.mxu0 0.0
  %312 = vmatpush1.msra.mxu0 0.0
  %313 = vmatprep.subr.mxu0 0.0
  %314 = vmatpush1.msra.mxu0 0.0
  %315 = vmatprep.subr.mxu0 0.0
  %316 = vmatpush1.msra.mxu0 0.0
  %317 = vmatprep.subr.mxu0 0.0
  %318 = vmatpush1.msra.mxu0 0.0
  %319 = vmatprep.subr.mxu0 0.0
  %320 = vmatpush1.msra.mxu0 0.0
  %321 = vmatprep.subr.mxu0 0.0
  %322 = vmatpush1.msra.mxu0 0.0
  %323 = vmatprep.subr.mxu0 0.0
  %324 = vmatpush1.msra.mxu0 0.0
  %325 = vmatprep.subr.mxu0 0.0
  %326 = vmatpush1.msra.mxu0 0.0
  %327 = vmatprep.subr.mxu0 0.0
  %328 = vmatpush1.msra.mxu0 0.0
  %329 = vmatprep.subr.mxu0 0.0
  %330 = vmatpush1.msra.mxu0 0.0
  %331 = vmatprep.mubr.f32.mxu0 0.0
  %332 = vmatmul.mubr.f32.gmra.mrb[0].mxu0 %v262
  %v333 = vpop.f32.mrb[0].mxu0
  %v334 = vadd.f32 0.0, %v333
  %v335 = vpop.f32.mrb[0].mxu0
  %336 = vdwg.mxu0
  %v337 = vadd.f32 %v266, %v334
  %v338 = vtanh.pop %v337
  %s339 = scalar_lea.vmem [#allocation3], 24
  %340 = vst [vmem:[%s339] sm:$0xff] %v338
  %s341 = scalar_lea.vmem %s0, 32
  %v342 = vld [vmem:[%s341] sm:$0xff]
  %343 = vmatprep.subr.mxu0 0.0
  %344 = vmatpush1.msra.mxu0 %v22
  %345 = vmatprep.subr.mxu0 0.0
  %346 = vmatpush1.msra.mxu0 %v23
  %347 = vmatprep.subr.mxu0 0.0
  %348 = vmatpush1.msra.mxu0 %v24
  %349 = vmatprep.subr.mxu0 0.0
  %350 = vmatpush1.msra.mxu0 %v25
  %351 = vmatprep.subr.mxu0 0.0
  %352 = vmatpush1.msra.mxu0 %v26
  %353 = vmatprep.subr.mxu0 0.0
  %354 = vmatpush1.msra.mxu0 %v27
  %355 = vmatprep.subr.mxu0 0.0
  %356 = vmatpush1.msra.mxu0 %v28
  %357 = vmatprep.subr.mxu0 0.0
  %358 = vmatpush1.msra.mxu0 %v29
  %359 = vmatprep.subr.mxu0 0.0
  %360 = vmatpush1.msra.mxu0 %v30
  %361 = vmatprep.subr.mxu0 0.0
  %362 = vmatpush1.msra.mxu0 %v31
  %363 = vmatprep.subr.mxu0 0.0
  %364 = vmatpush1.msra.mxu0 %v32
  %365 = vmatprep.subr.mxu0 0.0
  %366 = vmatpush1.msra.mxu0 %v33
  %367 = vmatprep.subr.mxu0 0.0
  %368 = vmatpush1.msra.mxu0 %v34
  %369 = vmatprep.subr.mxu0 0.0
  %370 = vmatpush1.msra.mxu0 %v35
  %371 = vmatprep.subr.mxu0 0.0
  %372 = vmatpush1.msra.mxu0 %v36
  %373 = vmatprep.subr.mxu0 0.0
  %374 = vmatpush1.msra.mxu0 %v37
  %375 = vmatprep.subr.mxu0 0.0
  %376 = vmatpush1.msra.mxu0 0.0
  %377 = vmatprep.subr.mxu0 0.0
  %378 = vmatpush1.msra.mxu0 0.0
  %379 = vmatprep.subr.mxu0 0.0
  %380 = vmatpush1.msra.mxu0 0.0
  %381 = vmatprep.subr.mxu0 0.0
  %382 = vmatpush1.msra.mxu0 0.0
  %383 = vmatprep.subr.mxu0 0.0
  %384 = vmatpush1.msra.mxu0 0.0
  %385 = vmatprep.subr.mxu0 0.0
  %386 = vmatpush1.msra.mxu0 0.0
  %387 = vmatprep.subr.mxu0 0.0
  %388 = vmatpush1.msra.mxu0 0.0
  %389 = vmatprep.subr.mxu0 0.0
  %390 = vmatpush1.msra.mxu0 0.0
  %391 = vmatprep.subr.mxu0 0.0
  %392 = vmatpush1.msra.mxu0 0.0
  %393 = vmatprep.subr.mxu0 0.0
  %394 = vmatpush1.msra.mxu0 0.0
  %395 = vmatprep.subr.mxu0 0.0
  %396 = vmatpush1.msra.mxu0 0.0
  %397 = vmatprep.subr.mxu0 0.0
  %398 = vmatpush1.msra.mxu0 0.0
  %399 = vmatprep.subr.mxu0 0.0
  %400 = vmatpush1.msra.mxu0 0.0
  %401 = vmatprep.subr.mxu0 0.0
  %402 = vmatpush1.msra.mxu0 0.0
  %403 = vmatprep.subr.mxu0 0.0
  %404 = vmatpush1.msra.mxu0 0.0
  %405 = vmatprep.subr.mxu0 0.0
  %406 = vmatpush1.msra.mxu0 0.0
  %407 = vmatprep.mubr.f32.mxu0 0.0
  %408 = vmatmul.mubr.f32.gmra.mrb[0].mxu0 %v338
  %v409 = vpop.f32.mrb[0].mxu0
  %v410 = vadd.f32 0.0, %v409
  %v411 = vpop.f32.mrb[0].mxu0
  %412 = vdwg.mxu0
  %v413 = vadd.f32 %v342, %v410
  %v414 = vtanh.pop %v413
  %s415 = scalar_lea.vmem [#allocation3], 32
  %416 = vst [vmem:[%s415] sm:$0xff] %v414
  %s417 = scalar_lea.vmem %s0, 40
  %v418 = vld [vmem:[%s417] sm:$0xff]
  %419 = vmatprep.subr.mxu0 0.0
  %420 = vmatpush1.msra.mxu0 %v22
  %421 = vmatprep.subr.mxu0 0.0
  %422 = vmatpush1.msra.mxu0 %v23
  %423 = vmatprep.subr.mxu0 0.0
  %424 = vmatpush1.msra.mxu0 %v24
  %425 = vmatprep.subr.mxu0 0.0
  %426 = vmatpush1.msra.mxu0 %v25
  %427 = vmatprep.subr.mxu0 0.0
  %428 = vmatpush1.msra.mxu0 %v26
  %429 = vmatprep.subr.mxu0 0.0
  %430 = vmatpush1.msra.mxu0 %v27
  %431 = vmatprep.subr.mxu0 0.0
  %432 = vmatpush1.msra.mxu0 %v28
  %433 = vmatprep.subr.mxu0 0.0
  %434 = vmatpush1.msra.mxu0 %v29
  %435 = vmatprep.subr.mxu0 0.0
  %436 = vmatpush1.msra.mxu0 %v30
  %437 = vmatprep.subr.mxu0 0.0
  %438 = vmatpush1.msra.mxu0 %v31
  %439 = vmatprep.subr.mxu0 0.0
  %440 = vmatpush1.msra.mxu0 %v32
  %441 = vmatprep.subr.mxu0 0.0
  %442 = vmatpush1.msra.mxu0 %v33
  %443 = vmatprep.subr.mxu0 0.0
  %444 = vmatpush1.msra.mxu0 %v34
  %445 = vmatprep.subr.mxu0 0.0
  %446 = vmatpush1.msra.mxu0 %v35
  %447 = vmatprep.subr.mxu0 0.0
  %448 = vmatpush1.msra.mxu0 %v36
  %449 = vmatprep.subr.mxu0 0.0
  %450 = vmatpush1.msra.mxu0 %v37
  %451 = vmatprep.subr.mxu0 0.0
  %452 = vmatpush1.msra.mxu0 0.0
  %453 = vmatprep.subr.mxu0 0.0
  %454 = vmatpush1.msra.mxu0 0.0
  %455 = vmatprep.subr.mxu0 0.0
  %456 = vmatpush1.msra.mxu0 0.0
  %457 = vmatprep.subr.mxu0 0.0
  %458 = vmatpush1.msra.mxu0 0.0
  %459 = vmatprep.subr.mxu0 0.0
  %460 = vmatpush1.msra.mxu0 0.0
  %461 = vmatprep.subr.mxu0 0.0
  %462 = vmatpush1.msra.mxu0 0.0
  %463 = vmatprep.subr.mxu0 0.0
  %464 = vmatpush1.msra.mxu0 0.0
  %465 = vmatprep.subr.mxu0 0.0
  %466 = vmatpush1.msra.mxu0 0.0
  %467 = vmatprep.subr.mxu0 0.0
  %468 = vmatpush1.msra.mxu0 0.0
  %469 = vmatprep.subr.mxu0 0.0
  %470 = vmatpush1.msra.mxu0 0.0
  %471 = vmatprep.subr.mxu0 0.0
  %472 = vmatpush1.msra.mxu0 0.0
  %473 = vmatprep.subr.mxu0 0.0
  %474 = vmatpush1.msra.mxu0 0.0
  %475 = vmatprep.subr.mxu0 0.0
  %476 = vmatpush1.msra.mxu0 0.0
  %477 = vmatprep.subr.mxu0 0.0
  %478 = vmatpush1.msra.mxu0 0.0
  %479 = vmatprep.subr.mxu0 0.0
  %480 = vmatpush1.msra.mxu0 0.0
  %481 = vmatprep.subr.mxu0 0.0
  %482 = vmatpush1.msra.mxu0 0.0
  %483 = vmatprep.mubr.f32.mxu0 0.0
  %484 = vmatmul.mubr.f32.gmra.mrb[0].mxu0 %v414
  %v485 = vpop.f32.mrb[0].mxu0
  %v486 = vadd.f32 0.0, %v485
  %v487 = vpop.f32.mrb[0].mxu0
  %488 = vdwg.mxu0
  %v489 = vadd.f32 %v418, %v486
  %v490 = vtanh.pop %v489
  %s491 = scalar_lea.vmem [#allocation3], 40
  %492 = vst [vmem:[%s491] sm:$0xff] %v490
  %s493 = scalar_lea.vmem %s0, 48
  %v494 = vld [vmem:[%s493] sm:$0xff]
  %495 = vmatprep.subr.mxu0 0.0
  %496 = vmatpush1.msra.mxu0 %v22
  %497 = vmatprep.subr.mxu0 0.0
  %498 = vmatpush1.msra.mxu0 %v23
  %499 = vmatprep.subr.mxu0 0.0
  %500 = vmatpush1.msra.mxu0 %v24
  %501 = vmatprep.subr.mxu0 0.0
  %502 = vmatpush1.msra.mxu0 %v25
  %503 = vmatprep.subr.mxu0 0.0
  %504 = vmatpush1.msra.mxu0 %v26
  %505 = vmatprep.subr.mxu0 0.0
  %506 = vmatpush1.msra.mxu0 %v27
  %507 = vmatprep.subr.mxu0 0.0
  %508 = vmatpush1.msra.mxu0 %v28
  %509 = vmatprep.subr.mxu0 0.0
  %510 = vmatpush1.msra.mxu0 %v29
  %511 = vmatprep.subr.mxu0 0.0
  %512 = vmatpush1.msra.mxu0 %v30
  %513 = vmatprep.subr.mxu0 0.0
  %514 = vmatpush1.msra.mxu0 %v31
  %515 = vmatprep.subr.mxu0 0.0
  %516 = vmatpush1.msra.mxu0 %v32
  %517 = vmatprep.subr.mxu0 0.0
  %518 = vmatpush1.msra.mxu0 %v33
  %519 = vmatprep.subr.mxu0 0.0
  %520 = vmatpush1.msra.mxu0 %v34
  %521 = vmatprep.subr.mxu0 0.0
  %522 = vmatpush1.msra.mxu0 %v35
  %523 = vmatprep.subr.mxu0 0.0
  %524 = vmatpush1.msra.mxu0 %v36
  %525 = vmatprep.subr.mxu0 0.0
  %526 = vmatpush1.msra.mxu0 %v37
  %527 = vmatprep.subr.mxu0 0.0
  %528 = vmatpush1.msra.mxu0 0.0
  %529 = vmatprep.subr.mxu0 0.0
  %530 = vmatpush1.msra.mxu0 0.0
  %531 = vmatprep.subr.mxu0 0.0
  %532 = vmatpush1.msra.mxu0 0.0
  %533 = vmatprep.subr.mxu0 0.0
  %534 = vmatpush1.msra.mxu0 0.0
  %535 = vmatprep.subr.mxu0 0.0
  %536 = vmatpush1.msra.mxu0 0.0
  %537 = vmatprep.subr.mxu0 0.0
  %538 = vmatpush1.msra.mxu0 0.0
  %539 = vmatprep.subr.mxu0 0.0
  %540 = vmatpush1.msra.mxu0 0.0
  %541 = vmatprep.subr.mxu0 0.0
  %542 = vmatpush1.msra.mxu0 0.0
  %543 = vmatprep.subr.mxu0 0.0
  %544 = vmatpush1.msra.mxu0 0.0
  %545 = vmatprep.subr.mxu0 0.0
  %546 = vmatpush1.msra.mxu0 0.0
  %547 = vmatprep.subr.mxu0 0.0
  %548 = vmatpush1.msra.mxu0 0.0
  %549 = vmatprep.subr.mxu0 0.0
  %550 = vmatpush1.msra.mxu0 0.0
  %551 = vmatprep.subr.mxu0 0.0
  %552 = vmatpush1.msra.mxu0 0.0
  %553 = vmatprep.subr.mxu0 0.0
  %554 = vmatpush1.msra.mxu0 0.0
  %555 = vmatprep.subr.mxu0 0.0
  %556 = vmatpush1.msra.mxu0 0.0
  %557 = vmatprep.subr.mxu0 0.0
  %558 = vmatpush1.msra.mxu0 0.0
  %559 = vmatprep.mubr.f32.mxu0 0.0
  %560 = vmatmul.mubr.f32.gmra.mrb[0].mxu0 %v490
  %v561 = vpop.f32.mrb[0].mxu0
  %v562 = vadd.f32 0.0, %v561
  %v563 = vpop.f32.mrb[0].mxu0
  %564 = vdwg.mxu0
  %v565 = vadd.f32 %v494, %v562
  %v566 = vtanh.pop %v565
  %s567 = scalar_lea.vmem [#allocation3], 48
  %568 = vst [vmem:[%s567] sm:$0xff] %v566
  %s569 = scalar_lea.vmem %s0, 56
  %v570 = vld [vmem:[%s569] sm:$0xff]
  %571 = vmatprep.subr.mxu0 0.0
  %572 = vmatpush1.msra.mxu0 %v22
  %573 = vmatprep.subr.mxu0 0.0
  %574 = vmatpush1.msra.mxu0 %v23
  %575 = vmatprep.subr.mxu0 0.0
  %576 = vmatpush1.msra.mxu0 %v24
  %577 = vmatprep.subr.mxu0 0.0
  %578 = vmatpush1.msra.mxu0 %v25
  %579 = vmatprep.subr.mxu0 0.0
  %580 = vmatpush1.msra.mxu0 %v26
  %581 = vmatprep.subr.mxu0 0.0
  %582 = vmatpush1.msra.mxu0 %v27
  %583 = vmatprep.subr.mxu0 0.0
  %584 = vmatpush1.msra.mxu0 %v28
  %585 = vmatprep.subr.mxu0 0.0
  %586 = vmatpush1.msra.mxu0 %v29
  %587 = vmatprep.subr.mxu0 0.0
  %588 = vmatpush1.msra.mxu0 %v30
  %589 = vmatprep.subr.mxu0 0.0
  %590 = vmatpush1.msra.mxu0 %v31
  %591 = vmatprep.subr.mxu0 0.0
  %592 = vmatpush1.msra.mxu0 %v32
  %593 = vmatprep.subr.mxu0 0.0
  %594 = vmatpush1.msra.mxu0 %v33
  %595 = vmatprep.subr.mxu0 0.0
  %596 = vmatpush1.msra.mxu0 %v34
  %597 = vmatprep.subr.mxu0 0.0
  %598 = vmatpush1.msra.mxu0 %v35
  %599 = vmatprep.subr.mxu0 0.0
  %600 = vmatpush1.msra.mxu0 %v36
  %601 = vmatprep.subr.mxu0 0.0
  %602 = vmatpush1.msra.mxu0 %v37
  %603 = vmatprep.subr.mxu0 0.0
  %604 = vmatpush1.msra.mxu0 0.0
  %605 = vmatprep.subr.mxu0 0.0
  %606 = vmatpush1.msra.mxu0 0.0
  %607 = vmatprep.subr.mxu0 0.0
  %608 = vmatpush1.msra.mxu0 0.0
  %609 = vmatprep.subr.mxu0 0.0
  %610 = vmatpush1.msra.mxu0 0.0
  %611 = vmatprep.subr.mxu0 0.0
  %612 = vmatpush1.msra.mxu0 0.0
  %613 = vmatprep.subr.mxu0 0.0
  %614 = vmatpush1.msra.mxu0 0.0
  %615 = vmatprep.subr.mxu0 0.0
  %616 = vmatpush1.msra.mxu0 0.0
  %617 = vmatprep.subr.mxu0 0.0
  %618 = vmatpush1.msra.mxu0 0.0
  %619 = vmatprep.subr.mxu0 0.0
  %620 = vmatpush1.msra.mxu0 0.0
  %621 = vmatprep.subr.mxu0 0.0
  %622 = vmatpush1.msra.mxu0 0.0
  %623 = vmatprep.subr.mxu0 0.0
  %624 = vmatpush1.msra.mxu0 0.0
  %625 = vmatprep.subr.mxu0 0.0
  %626 = vmatpush1.msra.mxu0 0.0
  %627 = vmatprep.subr.mxu0 0.0
  %628 = vmatpush1.msra.mxu0 0.0
  %629 = vmatprep.subr.mxu0 0.0
  %630 = vmatpush1.msra.mxu0 0.0
  %631 = vmatprep.subr.mxu0 0.0
  %632 = vmatpush1.msra.mxu0 0.0
  %633 = vmatprep.subr.mxu0 0.0
  %634 = vmatpush1.msra.mxu0 0.0
  %635 = vmatprep.mubr.f32.mxu0 0.0
  %636 = vmatmul.mubr.f32.gmra.mrb[0].mxu0 %v566
  %v637 = vpop.f32.mrb[0].mxu0
  %v638 = vadd.f32 0.0, %v637
  %v639 = vpop.f32.mrb[0].mxu0
  %640 = vdwg.mxu0
  %v641 = vadd.f32 %v570, %v638
  %v642 = vtanh.pop %v641
  %s643 = scalar_lea.vmem [#allocation3], 56
  %644 = vst [vmem:[%s643] sm:$0xff] %v642
  %645 = vst [vmem:[#allocation2] sm:$0xff] %v642
  %v646 = vld [vmem:[#allocation3] sm:$0xff]
  %v647 = vld [vmem:[#allocation3 + $0x8] sm:$0xff]
  %v648 = vld [vmem:[#allocation3 + $0x10] sm:$0xff]
  %v649 = vld [vmem:[#allocation3 + $0x18] sm:$0xff]
  %v650 = vld [vmem:[#allocation3 + $0x20] sm:$0xff]
  %v651 = vld [vmem:[#allocation3 + $0x28] sm:$0xff]
  %v652 = vld [vmem:[#allocation3 + $0x30] sm:$0xff]
  %v653 = vld [vmem:[#allocation3 + $0x38] sm:$0xff]
  %v654 = vld [vmem:[%s2] sm:$0xff]
  %v655 = vld [vmem:[%s2 + $0x8] sm:$0xff]
  %v656 = vld [vmem:[%s2 + $0x10] sm:$0xff]
  %v657 = vld [vmem:[%s2 + $0x18] sm:$0xff]
  %v658 = vld [vmem:[%s2 + $0x20] sm:$0xff]
  %v659 = vld [vmem:[%s2 + $0x28] sm:$0xff]
  %v660 = vld [vmem:[%s2 + $0x30] sm:$0xff]
  %v661 = vld [vmem:[%s2 + $0x38] sm:$0xff]
  %v662 = vld [vmem:[%s2 + $0x40] sm:$0xff]
  %v663 = vld [vmem:[%s2 + $0x48] sm:$0xff]
  %v664 = vld [vmem:[%s2 + $0x50] sm:$0xff]
  %v665 = vld [vmem:[%s2 + $0x58] sm:$0xff]
  %v666 = vld [vmem:[%s2 + $0x60] sm:$0xff]
  %v667 = vld [vmem:[%s2 + $0x68] sm:$0xff]
  %v668 = vld [vmem:[%s2 + $0x70] sm:$0xff]
  %v669 = vld [vmem:[%s2 + $0x78] sm:$0xff]
  %v670 = vld [vmem:[%s3] sm:$0x1]
  %v672 = vlaneseq
  %v673 = vshrl.u32 %v672, 7
  %v674 = vsub.s32 0, %v673
  %v675 = vrot.slane %v670, %v674
  %677 = vmatprep.subr.mxu0 0.0
  %678 = vmatpush1.msra.mxu0 %v654
  %679 = vmatprep.subr.mxu0 0.0
  %680 = vmatpush1.msra.mxu0 %v655
  %681 = vmatprep.subr.mxu0 0.0
  %682 = vmatpush1.msra.mxu0 %v656
  %683 = vmatprep.subr.mxu0 0.0
  %684 = vmatpush1.msra.mxu0 %v657
  %685 = vmatprep.subr.mxu0 0.0
  %686 = vmatpush1.msra.mxu0 %v658
  %687 = vmatprep.subr.mxu0 0.0
  %688 = vmatpush1.msra.mxu0 %v659
  %689 = vmatprep.subr.mxu0 0.0
  %690 = vmatpush1.msra.mxu0 %v660
  %691 = vmatprep.subr.mxu0 0.0
  %692 = vmatpush1.msra.mxu0 %v661
  %693 = vmatprep.subr.mxu0 0.0
  %694 = vmatpush1.msra.mxu0 %v662
  %695 = vmatprep.subr.mxu0 0.0
  %696 = vmatpush1.msra.mxu0 %v663
  %697 = vmatprep.subr.mxu0 0.0
  %698 = vmatpush1.msra.mxu0 %v664
  %699 = vmatprep.subr.mxu0 0.0
  %700 = vmatpush1.msra.mxu0 %v665
  %701 = vmatprep.subr.mxu0 0.0
  %702 = vmatpush1.msra.mxu0 %v666
  %703 = vmatprep.subr.mxu0 0.0
  %704 = vmatpush1.msra.mxu0 %v667
  %705 = vmatprep.subr.mxu0 0.0
  %706 = vmatpush1.msra.mxu0 %v668
  %707 = vmatprep.subr.mxu0 0.0
  %708 = vmatpush1.msra.mxu0 %v669
  %709 = vmatprep.subr.mxu0 0.0
  %710 = vmatpush1.msra.mxu0 0.0
  %711 = vmatprep.subr.mxu0 0.0
  %712 = vmatpush1.msra.mxu0 0.0
  %713 = vmatprep.subr.mxu0 0.0
  %714 = vmatpush1.msra.mxu0 0.0
  %715 = vmatprep.subr.mxu0 0.0
  %716 = vmatpush1.msra.mxu0 0.0
  %717 = vmatprep.subr.mxu0 0.0
  %718 = vmatpush1.msra.mxu0 0.0
  %719 = vmatprep.subr.mxu0 0.0
  %720 = vmatpush1.msra.mxu0 0.0
  %721 = vmatprep.subr.mxu0 0.0
  %722 = vmatpush1.msra.mxu0 0.0
  %723 = vmatprep.subr.mxu0 0.0
  %724 = vmatpush1.msra.mxu0 0.0
  %725 = vmatprep.subr.mxu0 0.0
  %726 = vmatpush1.msra.mxu0 0.0
  %727 = vmatprep.subr.mxu0 0.0
  %728 = vmatpush1.msra.mxu0 0.0
  %729 = vmatprep.subr.mxu0 0.0
  %730 = vmatpush1.msra.mxu0 0.0
  %731 = vmatprep.subr.mxu0 0.0
  %732 = vmatpush1.msra.mxu0 0.0
  %733 = vmatprep.subr.mxu0 0.0
  %734 = vmatpush1.msra.mxu0 0.0
  %735 = vmatprep.subr.mxu0 0.0
  %736 = vmatpush1.msra.mxu0 0.0
  %737 = vmatprep.subr.mxu0 0.0
  %738 = vmatpush1.msra.mxu0 0.0
  %739 = vmatprep.subr.mxu0 0.0
  %740 = vmatpush1.msra.mxu0 0.0
  %741 = vmatprep.mubr.f32.mxu0 0.0
  %742 = vmatmul.mubr.f32.gmra.mrb[0].mxu0 %v646
  %v743 = vpop.f32.mrb[0].mxu0
  %v744 = vadd.f32 %v675, %v743
  %v745 = vpop.f32.mrb[0].mxu0
  %746 = vmatprep.mubr.f32.mxu0 0.0
  %747 = vmatmul.mubr.f32.gmra.mrb[0].mxu0 %v647
  %v748 = vpop.f32.mrb[0].mxu0
  %v749 = vadd.f32 %v675, %v748
  %v750 = vpop.f32.mrb[0].mxu0
  %751 = vmatprep.mubr.f32.mxu0 0.0
  %752 = vmatmul.mubr.f32.gmra.mrb[0].mxu0 %v648
  %v753 = vpop.f32.mrb[0].mxu0
  %v754 = vadd.f32 %v675, %v753
  %v755 = vpop.f32.mrb[0].mxu0
  %756 = vmatprep.mubr.f32.mxu0 0.0
  %757 = vmatmul.mubr.f32.gmra.mrb[0].mxu0 %v649
  %v758 = vpop.f32.mrb[0].mxu0
  %v759 = vadd.f32 %v675, %v758
  %v760 = vpop.f32.mrb[0].mxu0
  %761 = vmatprep.mubr.f32.mxu0 0.0
  %762 = vmatmul.mubr.f32.gmra.mrb[0].mxu0 %v650
  %v763 = vpop.f32.mrb[0].mxu0
  %v764 = vadd.f32 %v675, %v763
  %v765 = vpop.f32.mrb[0].mxu0
  %766 = vmatprep.mubr.f32.mxu0 0.0
  %767 = vmatmul.mubr.f32.gmra.mrb[0].mxu0 %v651
  %v768 = vpop.f32.mrb[0].mxu0
  %v769 = vadd.f32 %v675, %v768
  %v770 = vpop.f32.mrb[0].mxu0
  %771 = vmatprep.mubr.f32.mxu0 0.0
  %772 = vmatmul.mubr.f32.gmra.mrb[0].mxu0 %v652
  %v773 = vpop.f32.mrb[0].mxu0
  %v774 = vadd.f32 %v675, %v773
  %v775 = vpop.f32.mrb[0].mxu0
  %776 = vmatprep.mubr.f32.mxu0 0.0
  %777 = vmatmul.mubr.f32.gmra.mrb[0].mxu0 %v653
  %v778 = vpop.f32.mrb[0].mxu0
  %v779 = vadd.f32 %v675, %v778
  %v780 = vpop.f32.mrb[0].mxu0
  %781 = vdwg.mxu0
  %782 = vst [vmem:[%s4] sm:$0xff] %v744
  %783 = vst [vmem:[%s4 + $0x8] sm:$0xff] %v749
  %784 = vst [vmem:[%s4 + $0x10] sm:$0xff] %v754
  %785 = vst [vmem:[%s4 + $0x18] sm:$0xff] %v759
  %786 = vst [vmem:[%s4 + $0x20] sm:$0xff] %v764
  %787 = vst [vmem:[%s4 + $0x28] sm:$0xff] %v769
  %788 = vst [vmem:[%s4 + $0x30] sm:$0xff] %v774
  %789 = vst [vmem:[%s4 + $0x38] sm:$0xff] %v779
  // Predicated region
  $region22: #{smcn_forward.1} parent=0 // pred_check
    _
  $region23: #{smcn_forward.1} parent=0 // pred_check_branch
    %791 = sbr.rel (0) target = $region25
  $region24: #{smcn_forward.1} parent=0 // pred_region
    _
  $region25: #{smcn_forward.1} parent=0 // pred_fallthru
    _
  // Predicated region
  $region26: #{smcn_forward.1} parent=0 // pred_check
    _
  $region27: #{smcn_forward.1} parent=0 // pred_check_branch
    %793 = sbr.rel (0) target = $region29
  $region28: #{smcn_forward.1} parent=0 // pred_region
    _
  $region29: #{smcn_forward.1} parent=0 // pred_fallthru
    _

</llo_original>
